<compile_context>
chip_gen: v7x
topology: tpu7x:2x2x1
jax: 0.10.0
libtpu: 0.0.40
codegen_flags: <defaults>
</compile_context>

<pallas_src>
import functools

import numpy as np
import jax
import jax.numpy as jnp
from jax.experimental import pallas as pl
from jax.experimental.pallas import tpu as pltpu

LANE = 128                      # TPU lane width
SUBLANE = 8                     # f32 sublane tile
MAX_TILE_ROWS = 1024            # 1024 * 128 * 4B = 512 KiB per tile
VMEM_LIMIT_BYTES = 32 * 1024 * 1024


def _cdiv(a, b):
    return -(-a // b)


def _num_partitions():
    """Use 2 grid partitions only on chips with 2 TensorCores (v7x megacore)."""
    try:
        kind = jax.devices()[0].device_kind.lower()
    except Exception:
        return 1
    return 2 if ("v7" in kind or "7x" in kind) else 1


# --------------------------------------------------------------------------
# Pallas kernel: per-graph lane-partial sums of r and r^2 (single pass)
# --------------------------------------------------------------------------
def _graph_moment_kernel(tile_graph_ref, r_ref, acc_ref, *,
                         tiles_per_part, graphs_pad):
    """Each grid step consumes one (tile_rows, 128) tile of r that belongs to
    exactly one graph (zero-padded, so padding contributes nothing).

    acc layout per partition: rows [0, graphs_pad)           -> sum(r)  partials
                              rows [graphs_pad, 2*graphs_pad) -> sum(r^2) partials
    (128 lane partials per row; final lane reduce happens in the wrapper).
    """
    t = pl.program_id(1)

    @pl.when(t == 0)
    def _():
        acc_ref[...] = jnp.zeros_like(acc_ref)

    g = tile_graph_ref[pl.program_id(0) * tiles_per_part + t]   # SMEM scalar

    r = r_ref[...]                                   # (tile_rows, 128)
    sr = jnp.sum(r, axis=0, keepdims=True)           # (1, 128)
    sr2 = jnp.sum(r * r, axis=0, keepdims=True)      # (1, 128)

    rows = jax.lax.broadcasted_iota(jnp.int32, (1, 2 * graphs_pad, LANE), 1)
    sel1 = (rows == g).astype(jnp.float32)
    sel2 = (rows == (g + graphs_pad)).astype(jnp.float32)
    acc_ref[...] += sel1 * sr[None] + sel2 * sr2[None]


# --------------------------------------------------------------------------
# Plain-JAX glue (tiny O(B)/O(N)/O(E) work, per the perf review)
# --------------------------------------------------------------------------
def _look_at_view_transform(dist, elev_deg, azim_deg):
    """pytorch3d.look_at_view_transform(dist, elev, azim) with defaults."""
    deg2rad = np.float32(np.pi / 180.0)
    elev = elev_deg * deg2rad
    azim = azim_deg * deg2rad
    x = dist * jnp.cos(elev) * jnp.sin(azim)
    y = dist * jnp.sin(elev)
    z = dist * jnp.cos(elev) * jnp.cos(azim)
    eye = jnp.stack([x, y, z], axis=-1)                 # camera position (at = 0)
    at = jnp.zeros_like(eye)
    up = jnp.broadcast_to(jnp.array([0.0, 1.0, 0.0], jnp.float32), eye.shape)

    def _normalize(v, eps=1e-5):
        nrm = jnp.sqrt(jnp.sum(v * v, axis=-1, keepdims=True))
        return v / jnp.maximum(nrm, eps)

    z_axis = _normalize(at - eye)
    x_axis = _normalize(jnp.cross(up, z_axis))
    y_axis = _normalize(jnp.cross(z_axis, x_axis))
    is_close = jnp.all(jnp.abs(x_axis) <= 5e-3, axis=1, keepdims=True)
    replacement = _normalize(jnp.cross(y_axis, z_axis))
    x_axis = jnp.where(is_close, replacement, x_axis)
    R = jnp.swapaxes(jnp.stack([x_axis, y_axis, z_axis], axis=1), 1, 2)
    T = -jnp.einsum('bij,bi->bj', R, eye)               # -(R^T @ eye)
    return R, T


def _project_nodes(angles, init_pos, batch_idx):
    """Camera composition + per-node projection + view normalization (plain JAX)."""
    num_graphs = angles.shape[0]
    N = init_pos.shape[0]
    R, T = _look_at_view_transform(1.0, angles[:, 0], angles[:, 1])

    eye4 = jnp.eye(4, dtype=jnp.float32)
    rot4 = jnp.tile(eye4[None], (num_graphs, 1, 1)).at[:, :3, :3].set(R)
    trans4 = jnp.tile(eye4[None], (num_graphs, 1, 1)).at[:, 3, :3].set(T)
    composed = jnp.einsum('bij,bjk->bik', rot4, trans4)
    swap = jnp.array([[1., 0., 0., 0.],
                      [0., 1., 0., 0.],
                      [0., 0., 0., 1.],
                      [0., 0., 1., 0.]], jnp.float32)
    transform_matrix = jnp.einsum('bij,jk->bik', composed, swap)   # (B,4,4)

    hom = jnp.concatenate([init_pos, jnp.ones((N, 1), jnp.float32)], axis=1)
    tmat = transform_matrix[batch_idx]                             # (N,4,4)
    proj = jnp.einsum('ni,nij->nj', hom, tmat)                     # row-vec @ matrix
    view = proj[:, :2]
    view = view - jnp.min(view, axis=0, keepdims=True)
    return view / jnp.max(view)                                    # (N,2)


# --------------------------------------------------------------------------
# Forward pass
# --------------------------------------------------------------------------
def stress_vp(angles, init_pos, n_sizes, full_edge_index, full_edge_attr):
    """Equivalent of StressVP.forward(angles, batch) with reduce=mean."""
    angles = jnp.asarray(angles, jnp.float32)
    init_pos = jnp.asarray(init_pos, jnp.float32)
    n_sizes_np = np.asarray(n_sizes, dtype=np.int32)
    fe = np.asarray(full_edge_index, dtype=np.int32)
    num_graphs = int(n_sizes_np.shape[0])
    E = int(fe.shape[1])

    batch_idx = np.repeat(np.arange(num_graphs, dtype=np.int32), n_sizes_np)  # (N,)
    node2d = _project_nodes(angles, init_pos, jnp.asarray(batch_idx))         # (N,2)

    # ---- O(E) prologue in plain JAX: r = ||start - end|| / d, graph-sorted ----
    eg = batch_idx[fe[0]]                               # static numpy graph ids
    order = np.argsort(eg, kind="stable")               # graph-contiguous permutation
    fe_s = fe[:, order]
    counts = np.bincount(eg, minlength=num_graphs).astype(np.int64)   # E_g per graph

    diff = node2d[jnp.asarray(fe_s[0])] - node2d[jnp.asarray(fe_s[1])]        # (E,2)
    d = jnp.asarray(full_edge_attr, jnp.float32)[jnp.asarray(order), 0]       # (E,)
    r = jnp.sqrt(jnp.sum(diff * diff, axis=1)) / d                            # (E,)

    # ---- lane-dense per-graph packing: whole tiles per graph, zero padded ----
    num_parts = _num_partitions()
    rows_per_graph = [_cdiv(max(int(c), 1), LANE) for c in counts]
    avg_rows = _cdiv(sum(rows_per_graph), max(num_graphs, 1))
    tile_rows = int(min(MAX_TILE_ROWS,
                        max(SUBLANE, _cdiv(avg_rows, SUBLANE) * SUBLANE)))
    tile_elems = tile_rows * LANE

    graphs_pad = max(SUBLANE, _cdiv(num_graphs, SUBLANE) * SUBLANE)
    dummy_graph = 2 * graphs_pad                        # matches no accumulator row

    segs, tile_graph_list = [], []
    start = 0
    for g in range(num_graphs):
        e_g = int(counts[g])
        if e_g > 0:
            n_tiles = _cdiv(e_g, tile_elems)
            seg = jnp.pad(r[start:start + e_g], (0, n_tiles * tile_elems - e_g))
            segs.append(seg)                            # zero padding -> sums unaffected
            tile_graph_list.extend([g] * n_tiles)
        start += e_g
    if not tile_graph_list:                             # degenerate: no edges at all
        segs.append(jnp.zeros((tile_elems,), jnp.float32))
        tile_graph_list.append(dummy_graph)
    extra = (-len(tile_graph_list)) % num_parts         # align tiles to partitions
    if extra:
        segs.append(jnp.zeros((extra * tile_elems,), jnp.float32))
        tile_graph_list.extend([dummy_graph] * extra)

    total_tiles = len(tile_graph_list)
    tiles_per_part = total_tiles // num_parts
    r_packed = jnp.concatenate(segs).reshape(total_tiles * tile_rows, LANE)
    tile_graph = jnp.asarray(np.asarray(tile_graph_list, np.int32))

    # ---- single streaming pallas_call: per-graph sums of r and r^2 ----
    elems = total_tiles * tile_elems
    acc = pl.pallas_call(
        functools.partial(_graph_moment_kernel,
                          tiles_per_part=tiles_per_part, graphs_pad=graphs_pad),
        out_shape=jax.ShapeDtypeStruct((num_parts, 2 * graphs_pad, LANE),
                                       jnp.float32),
        grid_spec=pltpu.PrefetchScalarGridSpec(
            num_scalar_prefetch=1,
            grid=(num_parts, tiles_per_part),
            in_specs=[pl.BlockSpec((tile_rows, LANE),
                                   lambda p, t, tg: (p * tiles_per_part + t, 0))],
            out_specs=pl.BlockSpec((1, 2 * graphs_pad, LANE),
                                   lambda p, t, tg: (p, 0, 0))),
        compiler_params=pltpu.CompilerParams(
            dimension_semantics=("parallel", "arbitrary"),
            vmem_limit_bytes=VMEM_LIMIT_BYTES),
        cost_estimate=pl.CostEstimate(
            flops=3 * elems, transcendentals=0,
            bytes_accessed=4 * elems + 4 * num_parts * 2 * graphs_pad * LANE),
    )(tile_graph, r_packed)

    # ---- O(B) epilogue: combine partitions/lanes, closed-form stress ----
    sums = jnp.sum(acc, axis=(0, 2))                    # (2*graphs_pad,)
    s1_g = sums[:num_graphs]                            # per-graph sum(eu/d)
    s2_g = sums[graphs_pad:graphs_pad + num_graphs]     # per-graph sum((eu/d)^2)
    scal = jnp.sum(s1_g) / jnp.sum(s2_g)                # S1/S2 (>= 0)
    a = jnp.abs(scal)
    e_g = jnp.asarray(counts.astype(np.float32))
    # sum_e (|scal|*r - 1)^2  ==  scal^2*S2_g - 2*|scal|*S1_g + E_g
    graph_stress_sum = scal * scal * s2_g - 2.0 * a * s1_g + e_g
    n_f = jnp.asarray(n_sizes_np, jnp.float32)
    graph_stress = graph_stress_sum * 1000.0 / (n_f * n_f - n_f)
    return jnp.mean(graph_stress)


# --------------------------------------------------------------------------
# Pure-JAX reference (mirrors the PyTorch module) for a self-check
# --------------------------------------------------------------------------
def stress_vp_reference(angles, init_pos, n_sizes, full_edge_index, full_edge_attr):
    angles = jnp.asarray(angles, jnp.float32)
    init_pos = jnp.asarray(init_pos, jnp.float32)
    n_sizes_np = np.asarray(n_sizes, dtype=np.int32)
    fe = np.asarray(full_edge_index, dtype=np.int32)
    num_graphs = int(n_sizes_np.shape[0])
    batch_idx = np.repeat(np.arange(num_graphs, dtype=np.int32), n_sizes_np)

    node2d = _project_nodes(angles, init_pos, jnp.asarray(batch_idx))
    start = node2d[jnp.asarray(fe[0])]
    end = node2d[jnp.asarray(fe[1])]
    eu = jnp.sqrt(jnp.sum((start - end) ** 2, axis=1))
    d = jnp.asarray(full_edge_attr, jnp.float32)[:, 0]
    scal = jnp.sum((eu / d) / jnp.sum(jnp.square(eu) / jnp.square(d)))
    coords = jnp.concatenate([start, end], axis=1)
    sc = scal * coords
    eu2 = jnp.sqrt(jnp.sum((sc[:, 0:2] - sc[:, 2:4]) ** 2, axis=1))
    edge_stress = jnp.square(jnp.abs(eu2 - d) / d)
    eg = jnp.asarray(batch_idx[fe[0]])
    graph_stress = jnp.zeros((num_graphs,), jnp.float32).at[eg].add(edge_stress)
    n_f = jnp.asarray(n_sizes_np, jnp.float32)
    graph_stress = graph_stress * 1000.0 / (n_f * n_f - n_f)
    return jnp.mean(graph_stress)


if __name__ == "__main__":
    key = jax.random.PRNGKey(0)
    k1, k2, k3, k4 = jax.random.split(key, 4)

    # small synthetic PyG-style batch: 2 graphs with 5 and 7 nodes
    n_list = [5, 7]
    num_graphs = len(n_list)
    N = sum(n_list)

    angles = jnp.stack([
        jax.random.uniform(k1, (num_graphs,), jnp.float32, -60.0, 60.0),  # elevation
        jax.random.uniform(k2, (num_graphs,), jnp.float32, 0.0, 360.0),   # azimuth
    ], axis=1)                                                            # (B, 2)
    init_pos = jax.random.normal(k3, (N, 3), jnp.float32)                 # batch.init_pos

    # full (directed, i != j) edge set per graph, with global node indices
    edges = []
    off = 0
    for nn_ in n_list:
        for i in range(nn_):
            for j in range(nn_):
                if i != j:
                    edges.append((off + i, off + j))
        off += nn_
    full_edge_index = np.asarray(edges, dtype=np.int32).T                 # (2, E)
    E = full_edge_index.shape[1]
    full_edge_attr = jax.random.uniform(k4, (E, 2), jnp.float32, 0.5, 3.0)

    result = stress_vp(angles, init_pos, np.asarray(n_list, np.int32),
                       full_edge_index, full_edge_attr)
    jax.block_until_ready(result)

    expected = stress_vp_reference(angles, init_pos, np.asarray(n_list, np.int32),
                                   full_edge_index, full_edge_attr)
    np.testing.assert_allclose(np.asarray(result), np.asarray(expected),
                               rtol=5e-3, atol=1e-3)
    print("KERNEL_OK")
</pallas_src>

<mosaic_0001>
module attributes {stable_mosaic.version = 11 : i64} {
  func.func @_graph_moment_kernel(%arg0: i32, %arg1: i32, %arg2: memref<2xi32, #tpu.memory_space<smem>>, %arg3: memref<8x128xf32, #tpu.memory_space<vmem>>, %arg4: memref<1x16x128xf32, #tpu.memory_space<vmem>>) attributes {dimension_semantics = [#tpu.dimension_semantics<parallel>, #tpu.dimension_semantics<arbitrary>], iteration_bounds = array<i64: 1, 2>, scalar_prefetch = 1 : i64, scratch_operands = 0 : i64, tpu.core_type = #tpu.core_type<tc>, window_params = [{transform_indices = @transform_0, window_bounds = array<i64: 8, 128>}, {transform_indices = @transform_1, window_bounds = array<i64: 1, 16, 128>}]} {
    %c0_i32 = arith.constant 0 : i32
    %0 = arith.cmpi eq, %arg1, %c0_i32 : i32
    %1 = arith.extui %0 : i1 to i32
    %c0_i32_0 = arith.constant 0 : i32
    %2 = arith.cmpi ne, %1, %c0_i32_0 : i32
    scf.if %2 {
      %cst_9 = arith.constant 0.000000e+00 : f32
      %33 = vector.broadcast %cst_9 : f32 to vector<1x16x128xf32>
      %c0_10 = arith.constant 0 : index
      %c0_11 = arith.constant 0 : index
      %c0_12 = arith.constant 0 : index
      %34 = vector.load %arg4[%c0_10, %c0_11, %c0_12] : memref<1x16x128xf32, #tpu.memory_space<vmem>>, vector<1x16x128xf32>
      tpu.vector_store %arg4[%c0_10, %c0_11, %c0_12], %33 {strides = array<i32>} : memref<1x16x128xf32, #tpu.memory_space<vmem>>, vector<1x16x128xf32>,
    } else {
    }
    %c2_i32 = arith.constant 2 : i32
    %3 = arith.muli %arg0, %c2_i32 : i32
    %4 = arith.addi %3, %arg1 : i32
    %5 = arith.index_cast %4 : i32 to index
    %6 = memref.load %arg2[%5] : memref<2xi32, #tpu.memory_space<smem>>
    %c0 = arith.constant 0 : index
    %c0_1 = arith.constant 0 : index
    %7 = vector.load %arg3[%c0, %c0_1] : memref<8x128xf32, #tpu.memory_space<vmem>>, vector<8x128xf32>
    %cst = arith.constant dense<0.000000e+00> : vector<128xf32>
    %8 = vector.multi_reduction <add>, %7, %cst [0] : vector<8x128xf32> to vector<128xf32>
    %9 = vector.shape_cast %8 : vector<128xf32> to vector<1x128xf32>
    %10 = arith.mulf %7, %7 : vector<8x128xf32>
    %cst_2 = arith.constant dense<0.000000e+00> : vector<128xf32>
    %11 = vector.multi_reduction <add>, %10, %cst_2 [0] : vector<8x128xf32> to vector<128xf32>
    %12 = vector.shape_cast %11 : vector<128xf32> to vector<1x128xf32>
    %13 = tpu.iota {dimensions = array<i32: 1>} : vector<1x16x128xi32>
    %14 = vector.broadcast %6 : i32 to vector<1x16x128xi32>
    %15 = arith.cmpi eq, %13, %14 : vector<1x16x128xi32>
    %16 = arith.extui %15 : vector<1x16x128xi1> to vector<1x16x128xi32>
    %17 = arith.sitofp %16 : vector<1x16x128xi32> to vector<1x16x128xf32>
    %c8_i32 = arith.constant 8 : i32
    %18 = arith.addi %6, %c8_i32 : i32
    %19 = vector.broadcast %18 : i32 to vector<1x16x128xi32>
    %20 = arith.cmpi eq, %13, %19 : vector<1x16x128xi32>
    %21 = arith.extui %20 : vector<1x16x128xi1> to vector<1x16x128xi32>
    %22 = arith.sitofp %21 : vector<1x16x128xi32> to vector<1x16x128xf32>
    %c0_3 = arith.constant 0 : index
    %c0_4 = arith.constant 0 : index
    %c0_5 = arith.constant 0 : index
    %23 = vector.load %arg4[%c0_3, %c0_4, %c0_5] : memref<1x16x128xf32, #tpu.memory_space<vmem>>, vector<1x16x128xf32>
    %24 = vector.shape_cast %9 : vector<1x128xf32> to vector<1x1x128xf32>
    %25 = vector.broadcast %24 : vector<1x1x128xf32> to vector<1x16x128xf32>
    %26 = arith.mulf %17, %25 : vector<1x16x128xf32>
    %27 = vector.shape_cast %12 : vector<1x128xf32> to vector<1x1x128xf32>
    %28 = vector.broadcast %27 : vector<1x1x128xf32> to vector<1x16x128xf32>
    %29 = arith.mulf %22, %28 : vector<1x16x128xf32>
    %30 = arith.addf %26, %29 : vector<1x16x128xf32>
    %31 = arith.addf %23, %30 : vector<1x16x128xf32>
    %c0_6 = arith.constant 0 : index
    %c0_7 = arith.constant 0 : index
    %c0_8 = arith.constant 0 : index
    %32 = vector.load %arg4[%c0_6, %c0_7, %c0_8] : memref<1x16x128xf32, #tpu.memory_space<vmem>>, vector<1x16x128xf32>
    tpu.vector_store %arg4[%c0_6, %c0_7, %c0_8], %31 {strides = array<i32>} : memref<1x16x128xf32, #tpu.memory_space<vmem>>, vector<1x16x128xf32>,
    return
  }
  func.func @transform_0(%arg0: i32, %arg1: i32, %arg2: memref<2xi32, #tpu.memory_space<smem>>) -> (i32, i32) {
    %c2_i32 = arith.constant 2 : i32
    %0 = arith.muli %arg0, %c2_i32 : i32
    %1 = arith.addi %0, %arg1 : i32
    %c0_i32 = arith.constant 0 : i32
    %c0_i32_0 = arith.constant 0 : i32
    return %1, %c0_i32 : i32, i32
  }
  func.func @transform_1(%arg0: i32, %arg1: i32, %arg2: memref<2xi32, #tpu.memory_space<smem>>) -> (i32, i32, i32) {
    %c0_i32 = arith.constant 0 : i32
    %c0_i32_0 = arith.constant 0 : i32
    %c0_i32_1 = arith.constant 0 : i32
    return %arg0, %c0_i32, %c0_i32_0 : i32, i32, i32
  }
}

</mosaic_0001>

<llo_original>
// kernel: tpu_custom_call.1
$region0: #{tpu_custom_call.1}
  #allocation0 [shape = 'u32[]', space=smem, size = 0x4, offset = 0x4, fixed_abs, tag = 'smem constant byte address 0x4 - core index']
  #allocation1 [shape = 'u32[144,128]{1,0:T(1,128)}', space=vmem, size = 0x12000, scoped, tag = 'internal scratch']
  #allocation2 [shape = 's32[1]{0}', space=sflag, size = 0x4, scoped, tag = 'scoped memory for tpu_custom_call.1']
  #allocation3 [shape = 'u8[512]{0}', space=smem, size = 0x200, scoped, tag = 'prefetched SMEM operand 0']
  %s0 = inlined_call_operand.hbm [shape: s32[2], index: 0, kind: input, shape index: {}]
  %s1 = inlined_call_operand.hbm [shape: f32[16,128], index: 1, kind: input, shape index: {}]
  %s2 = inlined_call_operand.hbm [shape: f32[1,16,128], index: 2, kind: output, shape index: {}]
  %s3 = sld [smem:[#allocation0]]
  $region45: #{tpu_custom_call.1} parent=0
    _
  %s5 = ssub.s32 1, %s3
  %s6 = scalar_select 0, %s5, %s3
  %8 = dma.hbm_to_smem %s0, 16, [#allocation3], [#allocation2]
  %9 = dma.done [#allocation2], 16
  %10 = sfence
  $region1: #{tpu_custom_call.1} parent=0
    #allocation4 [shape = 'u8[8192]{0}', space=vmem, size = 0x2000, scoped, tag = 'input window, operand 1']
    #allocation5 [shape = 's32[2]{0}', space=sflag, size = 0x8, scoped, tag = 'scoped memory for tpu_custom_call.1']
    #allocation6 [shape = 's32[2]{0}', space=sflag, size = 0x8, scoped, tag = 'scoped memory for tpu_custom_call.1']
    #allocation7 [shape = 'u8[8192]{0}', space=vmem, size = 0x2000, scoped, tag = 'output window, operand 0, single buffered']
    %11 = vsyncpa [#allocation5], 0
    %s12 = scalar_lea.sflag [#allocation5], 1
    %13 = vsyncpa %s12, 0
    %14 = vsyncpa [#allocation6], 0
    loop: start=0, step=1, limit=4
    $region2: #{tpu_custom_call.1} parent=1 // loop_pre_header
      _
    $region3: #{tpu_custom_call.1} parent=1 // loop_header
      %s16 = sphi 0, %s20
      %p17 = scmp.ge.s32.totalorder %s16, 4
      %s23 = sphi 0, %s35
      %s24 = sphi 0, %s31
      %s25 = sphi 0, %s23
      %s26 = sphi 0, %s24
      %s27 = sphi 0, %s25
      %s28 = sphi 0, %s26
      %s42 = sphi 0, %s44
      %s45 = sphi 0, %s42
      %s46 = sphi 0, %s45
      %s62 = sphi 0, %s46
      %s68 = sphi 0, %s70
      %s71 = sphi 0, %s68
      %s72 = sphi 0, %s71
      %s88 = sphi 0, %s72
    $region4: #{tpu_custom_call.1} parent=1 // loop_header_branch
      %19 = sbr.rel (%p17) target = $region8
    $region5: #{tpu_custom_call.1} parent=1 // loop_body
      %s21 = ssub.s32 %s16, 1
      %s22 = ssub.s32 %s16, 2
      %s29 = sadd.s32 1, %s24
      %p30 = scmp.ge.s32.totalorder %s29, 2
      %s31 = scalar_select %p30, 0, %s29
      %s32 = sadd.s32 1, %s23
      %s33 = scalar_select %p30, %s32, %s23
      %p34 = scmp.ge.s32.totalorder %s33, 1
      %s35 = scalar_select %p34, 0, %s33
      %s36 = smul.u32 %s23, 2
      %s37 = sadd.s32 %s36, %s24
      %s38 = smul.u32 %s35, 2
      %s39 = sadd.s32 %s38, %s31
      %s40 = ssub.s32 %s37, %s39
      %p41 = scmp.eq.s32.totalorder %s40, 0
      %s43 = sadd.s32 %s42, 1
      %s44 = scalar_select %p41, %s42, %s43
      %p47 = pneg %p41
      %p48 = scmp.eq.s32.totalorder %s16, 1
      %p49 = por %p47, %p48
      %p50 = scmp.ne.s32.totalorder %s42, %s45
      %p51 = scmp.eq.s32.totalorder %s16, 0
      %p52 = por %p50, %p51
      %p53 = scmp.ne.s32.totalorder %s42, %s45
      %p54 = scmp.eq.s32.totalorder %s21, 1
      %p55 = por %p53, %p54
      %p56 = scmp.ne.s32.totalorder %s45, %s46
      %p57 = scmp.eq.s32.totalorder %s21, 0
      %p58 = por %p56, %p57
      %p59 = scmp.ne.s32.totalorder %s45, %s46
      %p60 = scmp.eq.s32.totalorder %s22, 1
      %p61 = por %p59, %p60
      %p63 = scmp.ne.s32.totalorder %s46, %s62
      %p64 = scmp.eq.s32.totalorder %s22, 0
      %p65 = por %p63, %p64
      %s66 = ssub.s32 %s23, %s35
      %p67 = scmp.eq.s32.totalorder %s66, 0
      %s69 = sadd.s32 %s68, 1
      %s70 = scalar_select %p67, %s68, %s69
      %p73 = pneg %p67
      %p74 = scmp.eq.s32.totalorder %s16, 1
      %p75 = por %p73, %p74
      %p76 = scmp.ne.s32.totalorder %s68, %s71
      %p77 = scmp.eq.s32.totalorder %s16, 0
      %p78 = por %p76, %p77
      %p79 = scmp.ne.s32.totalorder %s68, %s71
      %p80 = scmp.eq.s32.totalorder %s21, 1
      %p81 = por %p79, %p80
      %p82 = scmp.ne.s32.totalorder %s71, %s72
      %p83 = scmp.eq.s32.totalorder %s21, 0
      %p84 = por %p82, %p83
      %p85 = scmp.ne.s32.totalorder %s71, %s72
      %p86 = scmp.eq.s32.totalorder %s22, 1
      %p87 = por %p85, %p86
      %p89 = scmp.ne.s32.totalorder %s72, %s88
      %p90 = scmp.eq.s32.totalorder %s22, 0
      %p91 = por %p89, %p90
      %p92 = scmp.le.s32.totalorder 1, %s16
      %p93 = scmp.lt.s32.totalorder %s16, 3
      %p94 = pnand %p92, %p93
      %p95 = pneg %p94
      // Predicated region
      $region9: #{tpu_custom_call.1} parent=5 // pred_check
        _
      $region10: #{tpu_custom_call.1} parent=5 // pred_check_branch
        %97 = sbr.rel (%p94) target = $region12
      $region11: #{tpu_custom_call.1} parent=5 // pred_region
        %s98 = ssub.s32 %s16, 1
      $region12: #{tpu_custom_call.1} parent=5 // pred_fallthru
        _
      %p99 = scmp.lt.s32.totalorder %s16, 2
      // Predicated region
      $region13: #{tpu_custom_call.1} parent=5 // pred_check
        %p100 = pneg %p99
      $region14: #{tpu_custom_call.1} parent=5 // pred_check_branch
        %102 = sbr.rel (%p100) target = $region16
      $region15: #{tpu_custom_call.1} parent=5 // pred_region
        // Predicated region
        $region17: #{tpu_custom_call.1} parent=15 // pred_check
          %p103 = pneg %p52
        $region18: #{tpu_custom_call.1} parent=15 // pred_check_branch
          %105 = sbr.rel (%p103) target = $region20
        $region19: #{tpu_custom_call.1} parent=15 // pred_region
          %s106 = sand.u32 %s42, 1
          %s107 = scalar_lea.sflag [#allocation5], %s106
          %s108 = sand.u32 %s42, 1
          %s109 = smul.addr %s108, 8
          %s110 = scalar_lea.vmem [#allocation4], %s109
          %s111 = smul.u32 %s23, 2
          %s112 = sadd.s32 %s111, %s24
          %s114 = ssub.s32 128, 128
          %115 = vsyncadd %s107, %s114
          %s116 = smul.addr %s112, 128
          %s117 = scalar_lea.hbm %s1, %s116
          %s119 = sshll.u32 %s110, 4
          %s120 = int_to_ptr.vmem [resolvable:$true] %s119
          %122 = dma.hbm_to_vmem [thread:$0]  %s117, 128, %s120, %s107
        $region20: #{tpu_custom_call.1} parent=15 // pred_fallthru
          _
      $region16: #{tpu_custom_call.1} parent=5 // pred_fallthru
        _
      %p123 = scmp.le.s32.totalorder 1, %s16
      %p124 = scmp.lt.s32.totalorder %s16, 3
      %p125 = pnand %p123, %p124
      %p126 = pneg %p125
      // Predicated region
      $region21: #{tpu_custom_call.1} parent=5 // pred_check
        _
      $region22: #{tpu_custom_call.1} parent=5 // pred_check_branch
        %128 = sbr.rel (%p125) target = $region24
      $region23: #{tpu_custom_call.1} parent=5 // pred_region
        %s129 = ssub.s32 %s16, 1
        %s130 = sand.u32 %s45, 1
        %s131 = scalar_lea.sflag [#allocation5], %s130
        %s132 = sand.u32 %s45, 1
        %s133 = smul.addr %s132, 8
        %s134 = scalar_lea.vmem [#allocation4], %s133
        // Predicated region
        $region25: #{tpu_custom_call.1} parent=23 // pred_check
          %p135 = pneg %p58
        $region26: #{tpu_custom_call.1} parent=23 // pred_check_branch
          %137 = sbr.rel (%p135) target = $region28
        $region27: #{tpu_custom_call.1} parent=23 // pred_region
          %138 = dma.done %s131, 128
        $region28: #{tpu_custom_call.1} parent=23 // pred_fallthru
          _
        %s139 = sand.u32 %s45, 1
        %s140 = scalar_lea.sflag [#allocation5], %s139
        %s141 = sand.u32 %s45, 1
        %s142 = smul.addr %s141, 8
        %s143 = scalar_lea.vmem [#allocation4], %s142
        %p144 = pneg %p58
        %p145 = pneg %p55
        %p146 = pneg %p84
        %p147 = pneg %p81
        %s148 = smul.u32 %s25, 2
        %s149 = sadd.s32 %s148, %s26
        %p150 = scmp.eq.s32.totalorder %s26, 0
        // Predicated region
        $region29: #{tpu_custom_call.1} parent=23 // pred_check
          %p151 = pneg %p150
        $region30: #{tpu_custom_call.1} parent=23 // pred_check_branch
          %153 = sbr.rel (%p151) target = $region32
        $region31: #{tpu_custom_call.1} parent=23 // pred_region
          %154 = vst [vmem:[#allocation7] sm:$0xff] 0.0
          %155 = vst [vmem:[#allocation7 + $0x8] sm:$0xff] 0.0
        $region32: #{tpu_custom_call.1} parent=23 // pred_fallthru
          _
        %s156 = smul.u32 %s25, 2
        %s157 = sadd.s32 %s156, %s26
        %s158 = sld [smem:[#allocation3 + %s157]]
        %v159 = vld [vmem:[%s134] sm:$0xff]
        %v160 = vrot.slane %v159, 4
        %v161 = vadd.f32 %v159, %v160
        %v162 = vrot.slane %v161, 2
        %v163 = vadd.f32 %v161, %v162
        %v164 = vrot.slane %v163, 1
        %v165 = vadd.f32 %v163, %v164
        %v166 = vmul.f32 %v159, %v159
        %v167 = vrot.slane %v166, 4
        %v168 = vadd.f32 %v166, %v167
        %v169 = vrot.slane %v168, 2
        %v170 = vadd.f32 %v168, %v169
        %v171 = vrot.slane %v170, 1
        %v172 = vadd.f32 %v170, %v171
        %v173 = vlaneseq
        %v174 = vshrl.u32 %v173, 7
        %v175 = vadd.s32 %v174, 8
        %v176 = vstv %s158
        %vm177 = vcmp.eq.s32.totalorder %v174, %v176
        %vm178 = vcmp.eq.s32.totalorder %v175, %v176
        %v179 = vsel %vm177, 1, 0
        %v180 = vsel %vm178, 1, 0
        %v181 = vcvt.s32.f32 %v179
        %v182 = vcvt.s32.f32 %v180
        %s183 = sadd.s32 %s158, 8
        %v184 = vstv %s183
        %vm185 = vcmp.eq.s32.totalorder %v174, %v184
        %vm186 = vcmp.eq.s32.totalorder %v175, %v184
        %v187 = vsel %vm185, 1, 0
        %v188 = vsel %vm186, 1, 0
        %v189 = vcvt.s32.f32 %v187
        %v190 = vcvt.s32.f32 %v188
        %v191 = vld [vmem:[#allocation7] sm:$0xff]
        %v192 = vld [vmem:[#allocation7 + $0x8] sm:$0xff]
        %v193 = vmul.f32 %v181, %v165
        %v194 = vmul.f32 %v182, %v165
        %v195 = vmul.f32 %v189, %v172
        %v196 = vmul.f32 %v190, %v172
        %v197 = vadd.f32 %v193, %v195
        %v198 = vadd.f32 %v194, %v196
        %v199 = vadd.f32 %v191, %v197
        %v200 = vadd.f32 %v192, %v198
        %201 = vst [vmem:[#allocation7] sm:$0xff] %v199
        %202 = vst [vmem:[#allocation7 + $0x8] sm:$0xff] %v200
        // Predicated region
        $region33: #{tpu_custom_call.1} parent=23 // pred_check
          %p203 = pneg %p81
        $region34: #{tpu_custom_call.1} parent=23 // pred_check_branch
          %205 = sbr.rel (%p203) target = $region36
        $region35: #{tpu_custom_call.1} parent=23 // pred_region
          %s207 = ssub.s32 256, 256
          %208 = vsyncadd [#allocation6], %s207
          %s209 = smul.addr %s25, 2
          %s210 = smul.addr %s209, 128
          %s211 = scalar_lea.hbm %s2, %s210
          %s212 = sshll.u32 [#allocation7], 4
          %s213 = int_to_ptr.vmem [resolvable:$true] %s212
          %218 = dma.vmem_to_hbm [thread:$0]  %s213, 256, %s211, [#allocation6], 128, 128, 8
        $region36: #{tpu_custom_call.1} parent=23 // pred_fallthru
          _
        // Predicated region
        $region37: #{tpu_custom_call.1} parent=23 // pred_check
          %p219 = pneg %p81
        $region38: #{tpu_custom_call.1} parent=23 // pred_check_branch
          %221 = sbr.rel (%p219) target = $region40
        $region39: #{tpu_custom_call.1} parent=23 // pred_region
          %222 = dma.done [#allocation6], 256
        $region40: #{tpu_custom_call.1} parent=23 // pred_fallthru
          _
      $region24: #{tpu_custom_call.1} parent=5 // pred_fallthru
        _
      %p223 = scmp.le.s32.totalorder 2, %s16
      // Predicated region
      $region41: #{tpu_custom_call.1} parent=5 // pred_check
        %p224 = pneg %p223
      $region42: #{tpu_custom_call.1} parent=5 // pred_check_branch
        %226 = sbr.rel (%p224) target = $region44
      $region43: #{tpu_custom_call.1} parent=5 // pred_region
        %s227 = ssub.s32 %s16, 2
      $region44: #{tpu_custom_call.1} parent=5 // pred_fallthru
        _
    $region6: #{tpu_custom_call.1} parent=1 // loop_footer
      %s20 = sadd.s32 1, %s16
    $region7: #{tpu_custom_call.1} parent=1 // loop_footer_branch
      %15 = sbr.rel target = $region3
    $region8: #{tpu_custom_call.1} parent=1 // loop_exit
      _
    %228 = vsyncpa [#allocation5], 1
    %s229 = scalar_lea.sflag [#allocation5], 1
    %230 = vsyncpa %s229, 1
    %231 = vsyncpa [#allocation6], 1
    %s232 = scalar_lea.sflag [#allocation6], 1
    %233 = vsyncpa %s232, 1

</llo_original>
